<compile_context>
chip_gen: v7x
topology: tpu7x:2x2x1
jax: 0.10.0
libtpu: 0.0.40
codegen_flags: <defaults>
</compile_context>

<pallas_src>
import jax
import jax.numpy as jnp
from jax.experimental import pallas as pl
from jax.experimental.pallas import tpu as pltpu

_MIN_PALLAS_ELEMS = 256 * 1024        # below this, fused XLA is as fast
_TARGET_TILE_BYTES = 4 * 1024 * 1024  # ~4 MiB per input tile (per stream)
_VMEM_LIMIT_BYTES = 40 * 1024 * 1024  # 24 MiB live + headroom; safe on v7x
_LANES = (1024, 512, 256, 128)        # widest lane-dense width that divides n


def _round_up(n, m):
    return ((n + m - 1) // m) * m


def _cdiv(a, b):
    return -(-a // b)


def _weighted_average_kernel(ratio_ref, x_ref, f_ref, o_ref):
    # ratio_ref: (1,) f32 post-sigmoid scalar in SMEM (sigmoid hoisted out).
    r = ratio_ref[0]
    x = x_ref[...].astype(jnp.float32)
    f = f_ref[...].astype(jnp.float32)
    # Convex blend in FMA form: f + r*(x - f) == r*x + (1-r)*f.
    o_ref[...] = (f + r * (x - f)).astype(o_ref.dtype)


def weighted_average(weight, x, output_feats, *, force_pallas=False):
    """weight: scalar f32 parameter (pre-sigmoid). x, output_feats: (B, C, H, W)."""
    assert x.shape == output_feats.shape
    assert x.dtype == output_feats.dtype
    orig_shape = x.shape
    n = x.size

    ratio = jax.nn.sigmoid(jnp.asarray(weight, jnp.float32))  # computed once

    # Tiny inputs: launch/pipeline overhead dominates; let XLA fuse the blend.
    if n < _MIN_PALLAS_ELEMS and not force_pallas:
        xf = x.astype(jnp.float32)
        ff = output_feats.astype(jnp.float32)
        return (ff + ratio * (xf - ff)).astype(x.dtype).reshape(orig_shape)

    # Pick the widest lane width (multiple of 128) dividing n -> zero padding.
    lane = None
    for cand in _LANES:
        if n % cand == 0:
            lane = cand
            break
    if lane is None:
        # Truly ragged: pad only up to the next lane multiple (<= 1023 elems).
        lane = _LANES[0]
        n_pad = _round_up(n, lane)
    else:
        n_pad = n
    rows = n_pad // lane

    x_flat = x.reshape(-1)
    f_flat = output_feats.reshape(-1)
    if n_pad != n:
        x_flat = jnp.pad(x_flat, (0, n_pad - n))
        f_flat = jnp.pad(f_flat, (0, n_pad - n))
    x2 = x_flat.reshape(rows, lane)
    f2 = f_flat.reshape(rows, lane)
    r1 = ratio.reshape(1)

    # Dtype-aware ~4 MiB tiles; split so the "parallel" grid has >= 2 steps so
    # both v7x TensorCores stream (harmless on single-TC v5e/v6e).
    itemsize = jnp.dtype(x.dtype).itemsize
    base_rows = max(16, _round_up(_TARGET_TILE_BYTES // (lane * itemsize), 16))
    br = min(base_rows, _round_up(_cdiv(rows, 2), 16))
    if br >= rows:
        br = rows  # single block == full array (only tiny forced-Pallas paths)
    grid_rows = _cdiv(rows, br)

    out2 = pl.pallas_call(
        _weighted_average_kernel,
        out_shape=jax.ShapeDtypeStruct((rows, lane), x.dtype),
        grid=(grid_rows,),
        in_specs=[
            pl.BlockSpec(memory_space=pltpu.SMEM),        # post-sigmoid ratio
            pl.BlockSpec((br, lane), lambda i: (i, 0)),   # x tile
            pl.BlockSpec((br, lane), lambda i: (i, 0)),   # output_feats tile
        ],
        out_specs=pl.BlockSpec((br, lane), lambda i: (i, 0)),
        compiler_params=pltpu.CompilerParams(
            dimension_semantics=("parallel",),            # v7x 2-TC sharding
            vmem_limit_bytes=_VMEM_LIMIT_BYTES,
        ),
    )(r1, x2, f2)

    out_flat = out2.reshape(-1)
    if n_pad != n:
        out_flat = out_flat[:n]
    return out_flat.reshape(orig_shape)


if __name__ == "__main__":
    key = jax.random.PRNGKey(0)
    kx, kf = jax.random.split(key)

    # Deterministic parameter init, matching nn.Parameter(torch.tensor(0.2)).
    weight = jnp.float32(0.2)
    ratio = jax.nn.sigmoid(weight)

    def ref_blend(x, f):
        xf = x.astype(jnp.float32)
        ff = f.astype(jnp.float32)
        return (ratio * xf + (1.0 - ratio) * ff).astype(x.dtype)

    # Case 1: small f32 (2,4,16,16) -- bypass path AND forced-Pallas path.
    B, C, H, W = 2, 4, 16, 16
    x = jax.random.normal(kx, (B, C, H, W), dtype=jnp.float32)
    f = jax.random.normal(kf, (B, C, H, W), dtype=jnp.float32)
    ref = ref_blend(x, f)
    out_bypass = jax.block_until_ready(weighted_average(weight, x, f))
    out_pallas = jax.block_until_ready(
        weighted_average(weight, x, f, force_pallas=True))
    assert out_pallas.shape == (B, C, H, W)
    assert jnp.allclose(out_bypass, ref, atol=1e-5, rtol=1e-5)
    assert jnp.allclose(out_pallas, ref, atol=1e-5, rtol=1e-5)

    # Case 2: small ragged f32 (H*W not a multiple of 128) -> minimal-pad path.
    x7 = jax.random.normal(kx, (2, 4, 7, 7), dtype=jnp.float32)
    f7 = jax.random.normal(kf, (2, 4, 7, 7), dtype=jnp.float32)
    out7 = jax.block_until_ready(
        weighted_average(weight, x7, f7, force_pallas=True))
    assert out7.shape == (2, 4, 7, 7)
    assert jnp.allclose(out7, ref_blend(x7, f7), atol=1e-5, rtol=1e-5)

    # Case 3: medium f32, n % 1024 == 0 -> no-pad, 2-step pipelined grid.
    xm = jax.random.normal(kx, (2, 8, 128, 128), dtype=jnp.float32)
    fm = jax.random.normal(kf, (2, 8, 128, 128), dtype=jnp.float32)
    outm = jax.block_until_ready(weighted_average(weight, xm, fm))
    assert jnp.allclose(outm, ref_blend(xm, fm), atol=1e-5, rtol=1e-5)

    # Case 4: medium ragged f32 -> pad-tail + masked partial last block.
    xr = jax.random.normal(kx, (2, 3, 211, 211), dtype=jnp.float32)
    fr = jax.random.normal(kf, (2, 3, 211, 211), dtype=jnp.float32)
    outr = jax.block_until_ready(weighted_average(weight, xr, fr))
    assert outr.shape == (2, 3, 211, 211)
    assert jnp.allclose(outr, ref_blend(xr, fr), atol=1e-5, rtol=1e-5)

    # Case 5: medium bf16 passthrough (half the HBM bytes, f32 math inside).
    xb = xm.astype(jnp.bfloat16)
    fb = fm.astype(jnp.bfloat16)
    outb = jax.block_until_ready(weighted_average(weight, xb, fb))
    assert outb.dtype == jnp.bfloat16
    assert jnp.allclose(outb.astype(jnp.float32),
                        ref_blend(xb, fb).astype(jnp.float32),
                        atol=2e-2, rtol=2e-2)

    print("KERNEL_OK")
</pallas_src>

<mosaic_0001>
module attributes {stable_mosaic.version = 11 : i64} {
  func.func @_weighted_average_kernel(%arg0: i32, %arg1: memref<1xf32, #tpu.memory_space<smem>>, %arg2: memref<2x1024xf32, #tpu.memory_space<vmem>>, %arg3: memref<2x1024xf32, #tpu.memory_space<vmem>>, %arg4: memref<2x1024xf32, #tpu.memory_space<vmem>>) attributes {dimension_semantics = [#tpu.dimension_semantics<parallel>], iteration_bounds = array<i64: 1>, scalar_prefetch = 0 : i64, scratch_operands = 0 : i64, tpu.core_type = #tpu.core_type<tc>, window_params = [{transform_indices = @transform_0, window_bounds = array<i64: 1>}, {transform_indices = @transform_1, window_bounds = array<i64: 2, 1024>}, {transform_indices = @transform_2, window_bounds = array<i64: 2, 1024>}, {transform_indices = @transform_3, window_bounds = array<i64: 2, 1024>}]} {
    %c0 = arith.constant 0 : index
    %0 = memref.load %arg1[%c0] : memref<1xf32, #tpu.memory_space<smem>>
    %c0_0 = arith.constant 0 : index
    %c0_1 = arith.constant 0 : index
    %1 = vector.load %arg2[%c0_0, %c0_1] : memref<2x1024xf32, #tpu.memory_space<vmem>>, vector<2x1024xf32>
    %c0_2 = arith.constant 0 : index
    %c0_3 = arith.constant 0 : index
    %2 = vector.load %arg3[%c0_2, %c0_3] : memref<2x1024xf32, #tpu.memory_space<vmem>>, vector<2x1024xf32>
    %3 = arith.subf %1, %2 : vector<2x1024xf32>
    %4 = vector.broadcast %0 : f32 to vector<2x1024xf32>
    %5 = arith.mulf %4, %3 : vector<2x1024xf32>
    %6 = arith.addf %2, %5 : vector<2x1024xf32>
    %c0_4 = arith.constant 0 : index
    %c0_5 = arith.constant 0 : index
    %7 = vector.load %arg4[%c0_4, %c0_5] : memref<2x1024xf32, #tpu.memory_space<vmem>>, vector<2x1024xf32>
    tpu.vector_store %arg4[%c0_4, %c0_5], %6 {strides = array<i32>} : memref<2x1024xf32, #tpu.memory_space<vmem>>, vector<2x1024xf32>,
    return
  }
  func.func @transform_0(%arg0: i32) -> i32 {
    %c0_i32 = arith.constant 0 : i32
    %c0_i32_0 = arith.constant 0 : i32
    return %c0_i32 : i32
  }
  func.func @transform_1(%arg0: i32) -> (i32, i32) {
    %c0_i32 = arith.constant 0 : i32
    %c0_i32_0 = arith.constant 0 : i32
    return %arg0, %c0_i32 : i32, i32
  }
  func.func @transform_2(%arg0: i32) -> (i32, i32) {
    %c0_i32 = arith.constant 0 : i32
    %c0_i32_0 = arith.constant 0 : i32
    return %arg0, %c0_i32 : i32, i32
  }
  func.func @transform_3(%arg0: i32) -> (i32, i32) {
    %c0_i32 = arith.constant 0 : i32
    %c0_i32_0 = arith.constant 0 : i32
    return %arg0, %c0_i32 : i32, i32
  }
}

</mosaic_0001>

<llo_original>
// kernel: tpu_custom_call.1
$region0: #{tpu_custom_call.1}
  #allocation0 [shape = 'u32[]', space=smem, size = 0x4, offset = 0x4, fixed_abs, tag = 'smem constant byte address 0x4 - core index']
  #allocation1 [shape = 'u32[144,128]{1,0:T(1,128)}', space=vmem, size = 0x12000, scoped, tag = 'internal scratch']
  #allocation2 [shape = 'f32[1]{0:T(128)S(6)}', space=smem, size = 0x200, scoped, tag = 'scoped memory for tpu_custom_call.1']
  %s0 = inlined_call_operand.<no memory space> [shape: f32[1], index: 0, kind: input, shape index: {}]
  %s1 = inlined_call_operand.hbm [shape: f32[2,1024], index: 1, kind: input, shape index: {}]
  %s2 = inlined_call_operand.hbm [shape: f32[2,1024], index: 2, kind: input, shape index: {}]
  %s3 = inlined_call_operand.hbm [shape: f32[2,1024], index: 3, kind: output, shape index: {}]
  %s4 = sld [smem:[#allocation0]]
  $region30: #{tpu_custom_call.1} parent=0
    _
  %s6 = ssub.s32 1, %s4
  %s7 = scalar_select 0, %s6, %s4
  %8 = sst [smem:[#allocation2]] %s0
  $region1: #{tpu_custom_call.1} parent=0
    #allocation3 [shape = 'u8[8192]{0}', space=vmem, size = 0x2000, scoped, tag = 'input window, operand 1, single buffered']
    #allocation4 [shape = 's32[1]{0}', space=sflag, size = 0x4, scoped, tag = 'scoped memory for tpu_custom_call.1']
    #allocation5 [shape = 's32[1]{0}', space=sflag, size = 0x4, scoped, tag = 'scoped memory for tpu_custom_call.1']
    #allocation6 [shape = 'u8[8192]{0}', space=vmem, size = 0x2000, scoped, tag = 'input window, operand 2, single buffered']
    #allocation7 [shape = 's32[1]{0}', space=sflag, size = 0x4, scoped, tag = 'scoped memory for tpu_custom_call.1']
    #allocation8 [shape = 'u8[8192]{0}', space=vmem, size = 0x2000, scoped, tag = 'output window, operand 0, single buffered']
    %9 = vsyncpa [#allocation4], 0
    %10 = vsyncpa [#allocation7], 0
    %11 = vsyncpa [#allocation5], 0
    // Predicated region
    $region2: #{tpu_custom_call.1} parent=1 // pred_check
      _
    $region3: #{tpu_custom_call.1} parent=1 // pred_check_branch
      %13 = sbr.rel (0) target = $region5
    $region4: #{tpu_custom_call.1} parent=1 // pred_region
      _
    $region5: #{tpu_custom_call.1} parent=1 // pred_fallthru
      _
    // Predicated region
    $region6: #{tpu_custom_call.1} parent=1 // pred_check
      _
    $region7: #{tpu_custom_call.1} parent=1 // pred_check_branch
      %15 = sbr.rel (0) target = $region9
    $region8: #{tpu_custom_call.1} parent=1 // pred_region
      %s17 = ssub.s32 256, 256
      %18 = vsyncadd [#allocation4], %s17
      %s20 = sshll.u32 [#allocation3], 4
      %s21 = int_to_ptr.vmem [resolvable:$true] %s20
      %23 = dma.hbm_to_vmem [thread:$0]  %s1, 256, %s21, [#allocation4]
    $region9: #{tpu_custom_call.1} parent=1 // pred_fallthru
      _
    // Predicated region
    $region10: #{tpu_custom_call.1} parent=1 // pred_check
      _
    $region11: #{tpu_custom_call.1} parent=1 // pred_check_branch
      %25 = sbr.rel (0) target = $region13
    $region12: #{tpu_custom_call.1} parent=1 // pred_region
      %s27 = ssub.s32 256, 256
      %28 = vsyncadd [#allocation7], %s27
      %s30 = sshll.u32 [#allocation6], 4
      %s31 = int_to_ptr.vmem [resolvable:$true] %s30
      %33 = dma.hbm_to_vmem [thread:$0]  %s2, 256, %s31, [#allocation7]
    $region13: #{tpu_custom_call.1} parent=1 // pred_fallthru
      _
    // Predicated region
    $region14: #{tpu_custom_call.1} parent=1 // pred_check
      _
    $region15: #{tpu_custom_call.1} parent=1 // pred_check_branch
      %35 = sbr.rel (0) target = $region17
    $region16: #{tpu_custom_call.1} parent=1 // pred_region
      %36 = dma.done [#allocation4], 256
    $region17: #{tpu_custom_call.1} parent=1 // pred_fallthru
      _
    // Predicated region
    $region18: #{tpu_custom_call.1} parent=1 // pred_check
      _
    $region19: #{tpu_custom_call.1} parent=1 // pred_check_branch
      %38 = sbr.rel (0) target = $region21
    $region20: #{tpu_custom_call.1} parent=1 // pred_region
      %39 = dma.done [#allocation7], 256
    $region21: #{tpu_custom_call.1} parent=1 // pred_fallthru
      _
    %s40 = sld [smem:[#allocation2]]
    %v41 = vld [vmem:[#allocation3] sm:$0xff]
    %v42 = vld [vmem:[#allocation3 + $0x8] sm:$0xff]
    %v43 = vld [vmem:[#allocation6] sm:$0xff]
    %v44 = vld [vmem:[#allocation6 + $0x8] sm:$0xff]
    %v45 = vsub.f32 %v41, %v43
    %v46 = vsub.f32 %v42, %v44
    %v47 = vstv %s40
    %v48 = vmul.f32 %v47, %v45
    %v49 = vmul.f32 %v47, %v46
    %v50 = vadd.f32 %v43, %v48
    %v51 = vadd.f32 %v44, %v49
    %52 = vst [vmem:[#allocation8] sm:$0xff] %v50
    %53 = vst [vmem:[#allocation8 + $0x8] sm:$0xff] %v51
    // Predicated region
    $region22: #{tpu_custom_call.1} parent=1 // pred_check
      _
    $region23: #{tpu_custom_call.1} parent=1 // pred_check_branch
      %55 = sbr.rel (0) target = $region25
    $region24: #{tpu_custom_call.1} parent=1 // pred_region
      %s57 = ssub.s32 256, 256
      %58 = vsyncadd [#allocation5], %s57
      %s60 = sshll.u32 [#allocation8], 4
      %s61 = int_to_ptr.vmem [resolvable:$true] %s60
      %63 = dma.vmem_to_hbm [thread:$0]  %s61, 256, %s3, [#allocation5]
    $region25: #{tpu_custom_call.1} parent=1 // pred_fallthru
      _
    // Predicated region
    $region26: #{tpu_custom_call.1} parent=1 // pred_check
      _
    $region27: #{tpu_custom_call.1} parent=1 // pred_check_branch
      %65 = sbr.rel (0) target = $region29
    $region28: #{tpu_custom_call.1} parent=1 // pred_region
      %66 = dma.done [#allocation5], 256
    $region29: #{tpu_custom_call.1} parent=1 // pred_fallthru
      _
    %67 = vsyncpa [#allocation4], 1
    %68 = vsyncpa [#allocation7], 1
    %69 = vsyncpa [#allocation5], 1

</llo_original>
